<compile_context>
chip_gen: v7x
topology: tpu7x:2x2x1
jax: 0.10.0
libtpu: 0.0.40
codegen_flags: <defaults>
</compile_context>

<pallas_src>
import functools

import jax
import jax.numpy as jnp
from jax.experimental import pallas as pl
from jax.experimental.pallas import tpu as pltpu

NUM_CHANNELS = 16
IN_FEATURES = NUM_CHANNELS * 3   # 48
HIDDEN = 128
OUT_FEATURES = 16


def _round_up(x, m):
    return (x + m - 1) // m * m


def _choose_tile(n, tile_m):
    """Pick a row tile: large (amortize ~0.35us/step), even & balanced grid for v7x."""
    tile = min(tile_m, _round_up(n, 8))
    steps = pl.cdiv(n, tile)
    if steps == 1 and n >= 4096:
        steps = 2                                  # give both v7x TensorCores a share
    if steps > 1:
        steps = _round_up(steps, 2)                # even step count (2-TC balance)
        tile = _round_up(pl.cdiv(n, steps), 8)     # balanced tiles, no tiny ragged tail
    return tile


def neural_ca_kernel(x_ref, w1_ref, w2_ref, o_ref):
    # x_ref: (tile, 48) f32, w1_ref: (48, 128) bf16, w2_ref: (128, 16) bf16,
    # o_ref: (tile, 16) f32.
    x = x_ref[...].astype(jnp.bfloat16)                       # cast in-kernel (VPU)
    h = jnp.dot(x, w1_ref[...], preferred_element_type=jnp.float32)
    h = jnp.maximum(h, 0.0).astype(jnp.bfloat16)              # ReLU f32 -> bf16 for MXU
    y = jnp.dot(h, w2_ref[...], preferred_element_type=jnp.float32)
    o_ref[...] = y.astype(o_ref.dtype)


def prepare_params(w1_t, w2_t):
    """One-time weight prep: bf16 copies stored transposed (in, out)."""
    return w1_t.astype(jnp.bfloat16), w2_t.astype(jnp.bfloat16)


@functools.partial(jax.jit, static_argnames=("tile_m",))
def neural_ca_forward(x, w1_bf, w2_bf, *, tile_m=8192):
    """x: (..., 48) float32; w1_bf: (48, 128) bf16; w2_bf: (128, 16) bf16.

    Returns (..., 16) in x.dtype (f32 accumulation throughout).
    """
    lead_shape = x.shape[:-1]
    x2d = x.reshape(-1, IN_FEATURES)
    n = x2d.shape[0]

    tile = _choose_tile(n, tile_m)
    grid = (pl.cdiv(n, tile),)

    cost = pl.CostEstimate(
        flops=2 * n * (IN_FEATURES * HIDDEN + HIDDEN * OUT_FEATURES),
        transcendentals=0,
        bytes_accessed=(n * (IN_FEATURES * 4 + OUT_FEATURES * 4)
                        + IN_FEATURES * HIDDEN * 2
                        + HIDDEN * OUT_FEATURES * 2),
    )

    out = pl.pallas_call(
        neural_ca_kernel,
        out_shape=jax.ShapeDtypeStruct((n, OUT_FEATURES), jnp.float32),
        grid_spec=pltpu.PrefetchScalarGridSpec(
            num_scalar_prefetch=0,
            grid=grid,
            in_specs=[
                pl.BlockSpec((tile, IN_FEATURES), lambda i: (i, 0)),
                pl.BlockSpec((IN_FEATURES, HIDDEN), lambda i: (0, 0)),
                pl.BlockSpec((HIDDEN, OUT_FEATURES), lambda i: (0, 0)),
            ],
            out_specs=pl.BlockSpec((tile, OUT_FEATURES), lambda i: (i, 0)),
        ),
        compiler_params=pltpu.CompilerParams(
            dimension_semantics=("parallel",)),
        cost_estimate=cost,
    )(x2d, w1_bf, w2_bf)

    return out.reshape(*lead_shape, OUT_FEATURES).astype(x.dtype)


def init_params(key):
    """Deterministic init mimicking nn.Linear defaults; fc2 weights zeroed as in __init__."""
    k1, _ = jax.random.split(key)
    bound1 = 1.0 / jnp.sqrt(jnp.float32(IN_FEATURES))
    # fc1.weight has shape (128, 48) in PyTorch; we store its transpose (48, 128).
    w1_t = jax.random.uniform(k1, (IN_FEATURES, HIDDEN),
                              minval=-bound1, maxval=bound1, dtype=jnp.float32)
    # fc2.weight.data *= 0  ->  all zeros, shape (16, 128); stored transposed (128, 16).
    w2_t = jnp.zeros((HIDDEN, OUT_FEATURES), dtype=jnp.float32)
    return w1_t, w2_t


if __name__ == "__main__":
    key = jax.random.PRNGKey(0)
    k_x, k_w1, k_w2 = jax.random.split(key, 3)

    # Small NCA-like state: batch=2, 16x16 cells, 48-dim perception vector per cell.
    x = jax.random.normal(k_x, (2, 16, 16, IN_FEATURES), dtype=jnp.float32)

    # 1) Faithful module init (fc2 zeroed) -> forward must return all zeros.
    w1_t, w2_t = init_params(k_w1)
    w1_bf, w2_bf = prepare_params(w1_t, w2_t)
    y0 = jax.block_until_ready(neural_ca_forward(x, w1_bf, w2_bf))
    assert y0.shape == (2, 16, 16, OUT_FEATURES)
    assert bool(jnp.all(y0 == 0.0))

    # 2) Non-zero fc2 to exercise the full numeric path against a pure-JAX reference
    #    that follows the same dtype path (bf16 x/w1 matmul, f32 ReLU, bf16 h/w2 matmul).
    w2_rand = (jax.random.normal(k_w2, (HIDDEN, OUT_FEATURES), dtype=jnp.float32)
               / jnp.sqrt(jnp.float32(HIDDEN)))
    _, w2_rand_bf = prepare_params(w1_t, w2_rand)
    y = jax.block_until_ready(neural_ca_forward(x, w1_bf, w2_rand_bf))

    x_bf = x.reshape(-1, IN_FEATURES).astype(jnp.bfloat16)
    h_ref = jnp.maximum(
        jnp.dot(x_bf, w1_bf, preferred_element_type=jnp.float32), 0.0)
    ref = jnp.dot(h_ref.astype(jnp.bfloat16), w2_rand_bf,
                  preferred_element_type=jnp.float32)
    ref = ref.reshape(2, 16, 16, OUT_FEATURES)
    assert y.shape == ref.shape
    assert jnp.allclose(y, ref, atol=2e-2, rtol=2e-2), \
        float(jnp.max(jnp.abs(y - ref)))

    print("KERNEL_OK")
</pallas_src>

<mosaic_0001>
module attributes {stable_mosaic.version = 11 : i64} {
  func.func @neural_ca_kernel(%arg0: i32, %arg1: memref<512x48xf32, #tpu.memory_space<vmem>>, %arg2: memref<48x128xbf16, #tpu.memory_space<vmem>>, %arg3: memref<128x16xbf16, #tpu.memory_space<vmem>>, %arg4: memref<512x16xf32, #tpu.memory_space<vmem>>) attributes {dimension_semantics = [#tpu.dimension_semantics<parallel>], iteration_bounds = array<i64: 1>, scalar_prefetch = 0 : i64, scratch_operands = 0 : i64, tpu.core_type = #tpu.core_type<tc>, window_params = [{transform_indices = @transform_0, window_bounds = array<i64: 512, 48>}, {pipeline_mode = #tpu.pipeline_mode<synchronous>, transform_indices = @transform_1, window_bounds = array<i64: 48, 128>}, {pipeline_mode = #tpu.pipeline_mode<synchronous>, transform_indices = @transform_2, window_bounds = array<i64: 128, 16>}, {transform_indices = @transform_3, window_bounds = array<i64: 512, 16>}]} {
    %c0 = arith.constant 0 : index
    %c0_0 = arith.constant 0 : index
    %0 = vector.load %arg1[%c0, %c0_0] : memref<512x48xf32, #tpu.memory_space<vmem>>, vector<512x48xf32>
    %1 = arith.truncf %0 : vector<512x48xf32> to vector<512x48xbf16>
    %c0_1 = arith.constant 0 : index
    %c0_2 = arith.constant 0 : index
    %2 = vector.load %arg2[%c0_1, %c0_2] : memref<48x128xbf16, #tpu.memory_space<vmem>>, vector<48x128xbf16>
    %cst = arith.constant dense<0.000000e+00> : vector<512x128xf32>
    %3 = tpu.matmul %1, %2, %cst {dimension_numbers = #tpu.dot_dimension_numbers<[1], [0], [0], [1], [0, 0, 1, 1], [], []>} : vector<512x48xbf16>, vector<48x128xbf16>, vector<512x128xf32> -> vector<512x128xf32>
    %cst_3 = arith.constant 0.000000e+00 : f32
    %4 = vector.broadcast %cst_3 : f32 to vector<512x128xf32>
    %5 = arith.maximumf %3, %4 : vector<512x128xf32>
    %6 = arith.truncf %5 : vector<512x128xf32> to vector<512x128xbf16>
    %c0_4 = arith.constant 0 : index
    %c0_5 = arith.constant 0 : index
    %7 = vector.load %arg3[%c0_4, %c0_5] : memref<128x16xbf16, #tpu.memory_space<vmem>>, vector<128x16xbf16>
    %cst_6 = arith.constant dense<0.000000e+00> : vector<512x16xf32>
    %8 = tpu.matmul %6, %7, %cst_6 {dimension_numbers = #tpu.dot_dimension_numbers<[1], [0], [0], [1], [0, 0, 1, 1], [], []>} : vector<512x128xbf16>, vector<128x16xbf16>, vector<512x16xf32> -> vector<512x16xf32>
    %c0_7 = arith.constant 0 : index
    %c0_8 = arith.constant 0 : index
    %9 = vector.load %arg4[%c0_7, %c0_8] : memref<512x16xf32, #tpu.memory_space<vmem>>, vector<512x16xf32>
    tpu.vector_store %arg4[%c0_7, %c0_8], %8 {strides = array<i32>} : memref<512x16xf32, #tpu.memory_space<vmem>>, vector<512x16xf32>,
    return
  }
  func.func @transform_0(%arg0: i32) -> (i32, i32) {
    %c0_i32 = arith.constant 0 : i32
    %c0_i32_0 = arith.constant 0 : i32
    return %arg0, %c0_i32 : i32, i32
  }
  func.func @transform_1(%arg0: i32) -> (i32, i32) {
    %c0_i32 = arith.constant 0 : i32
    %c0_i32_0 = arith.constant 0 : i32
    %c0_i32_1 = arith.constant 0 : i32
    return %c0_i32, %c0_i32_0 : i32, i32
  }
  func.func @transform_2(%arg0: i32) -> (i32, i32) {
    %c0_i32 = arith.constant 0 : i32
    %c0_i32_0 = arith.constant 0 : i32
    %c0_i32_1 = arith.constant 0 : i32
    return %c0_i32, %c0_i32_0 : i32, i32
  }
  func.func @transform_3(%arg0: i32) -> (i32, i32) {
    %c0_i32 = arith.constant 0 : i32
    %c0_i32_0 = arith.constant 0 : i32
    return %arg0, %c0_i32 : i32, i32
  }
}

</mosaic_0001>

<llo_original>
// kernel: neural_ca_forward.1
$region0: #{neural_ca_forward.1}
  #allocation0 [shape = 'u32[]', space=smem, size = 0x4, offset = 0x4, fixed_abs, tag = 'smem constant byte address 0x4 - core index']
  #allocation1 [shape = 'u32[144,128]{1,0:T(1,128)}', space=vmem, size = 0x12000, scoped, tag = 'internal scratch']
  %s0 = inlined_call_operand.hbm [shape: f32[512,48], index: 0, kind: input, shape index: {}]
  %s1 = inlined_call_operand.vmem [shape: bf16[48,128], index: 1, kind: input, shape index: {}]
  %s2 = inlined_call_operand.vmem [shape: bf16[128,16], index: 2, kind: input, shape index: {}]
  %s3 = inlined_call_operand.hbm [shape: f32[512,16], index: 3, kind: output, shape index: {}]
  %s4 = sld [smem:[#allocation0]]
  $region26: #{neural_ca_forward.1} parent=0
    _
  %s6 = ssub.s32 1, %s4
  %s7 = scalar_select 0, %s6, %s4
  $region1: #{neural_ca_forward.1} parent=0
    #allocation2 [shape = 'u8[262144]{0}', space=vmem, size = 0x40000, scoped, tag = 'input window, operand 0, single buffered']
    #allocation3 [shape = 's32[1]{0}', space=sflag, size = 0x4, scoped, tag = 'scoped memory for neural_ca_forward.1']
    #allocation4 [shape = 's32[1]{0}', space=sflag, size = 0x4, scoped, tag = 'scoped memory for neural_ca_forward.1']
    #allocation5 [shape = 'u8[262144]{0}', space=vmem, size = 0x40000, scoped, tag = 'output window, operand 0, single buffered']
    %8 = vsyncpa [#allocation3], 0
    %9 = vsyncpa [#allocation4], 0
    // Predicated region
    $region2: #{neural_ca_forward.1} parent=1 // pred_check
      _
    $region3: #{neural_ca_forward.1} parent=1 // pred_check_branch
      %11 = sbr.rel (0) target = $region5
    $region4: #{neural_ca_forward.1} parent=1 // pred_region
      %s13 = ssub.s32 8192, 8192
      %14 = vsyncadd [#allocation3], %s13
      %s15 = sshll.u32 [#allocation2], 4
      %s16 = int_to_ptr.vmem [resolvable:$true] %s15
      %21 = dma.hbm_to_vmem [thread:$0]  %s0, 8192, %s16, [#allocation3], 128, 128, 8
    $region5: #{neural_ca_forward.1} parent=1 // pred_fallthru
      _
    // Predicated region
    $region6: #{neural_ca_forward.1} parent=1 // pred_check
      _
    $region7: #{neural_ca_forward.1} parent=1 // pred_check_branch
      %23 = sbr.rel (0) target = $region9
    $region8: #{neural_ca_forward.1} parent=1 // pred_region
      _
    $region9: #{neural_ca_forward.1} parent=1 // pred_fallthru
      _
    // Predicated region
    $region10: #{neural_ca_forward.1} parent=1 // pred_check
      _
    $region11: #{neural_ca_forward.1} parent=1 // pred_check_branch
      %25 = sbr.rel (0) target = $region13
    $region12: #{neural_ca_forward.1} parent=1 // pred_region
      _
    $region13: #{neural_ca_forward.1} parent=1 // pred_fallthru
      _
    // Predicated region
    $region14: #{neural_ca_forward.1} parent=1 // pred_check
      _
    $region15: #{neural_ca_forward.1} parent=1 // pred_check_branch
      %27 = sbr.rel (0) target = $region17
    $region16: #{neural_ca_forward.1} parent=1 // pred_region
      %28 = dma.done [#allocation3], 8192
    $region17: #{neural_ca_forward.1} parent=1 // pred_fallthru
      _
    %v30 = vld [vmem:[#allocation2] sm:$0xff]
    %v31 = vld [vmem:[#allocation2 + $0x8] sm:$0xff]
    %v32 = vld [vmem:[#allocation2 + $0x10] sm:$0xff]
    %v33 = vld [vmem:[#allocation2 + $0x18] sm:$0xff]
    %v34 = vld [vmem:[#allocation2 + $0x20] sm:$0xff]
    %v35 = vld [vmem:[#allocation2 + $0x28] sm:$0xff]
    %v36 = vld [vmem:[#allocation2 + $0x30] sm:$0xff]
    %v37 = vld [vmem:[#allocation2 + $0x38] sm:$0xff]
    %v38 = vld [vmem:[#allocation2 + $0x40] sm:$0xff]
    %v39 = vld [vmem:[#allocation2 + $0x48] sm:$0xff]
    %v40 = vld [vmem:[#allocation2 + $0x50] sm:$0xff]
    %v41 = vld [vmem:[#allocation2 + $0x58] sm:$0xff]
    %v42 = vld [vmem:[#allocation2 + $0x60] sm:$0xff]
    %v43 = vld [vmem:[#allocation2 + $0x68] sm:$0xff]
    %v44 = vld [vmem:[#allocation2 + $0x70] sm:$0xff]
    %v45 = vld [vmem:[#allocation2 + $0x78] sm:$0xff]
    %v46 = vld [vmem:[#allocation2 + $0x80] sm:$0xff]
    %v47 = vld [vmem:[#allocation2 + $0x88] sm:$0xff]
    %v48 = vld [vmem:[#allocation2 + $0x90] sm:$0xff]
    %v49 = vld [vmem:[#allocation2 + $0x98] sm:$0xff]
    %v50 = vld [vmem:[#allocation2 + $0xa0] sm:$0xff]
    %v51 = vld [vmem:[#allocation2 + $0xa8] sm:$0xff]
    %v52 = vld [vmem:[#allocation2 + $0xb0] sm:$0xff]
    %v53 = vld [vmem:[#allocation2 + $0xb8] sm:$0xff]
    %v54 = vld [vmem:[#allocation2 + $0xc0] sm:$0xff]
    %v55 = vld [vmem:[#allocation2 + $0xc8] sm:$0xff]
    %v56 = vld [vmem:[#allocation2 + $0xd0] sm:$0xff]
    %v57 = vld [vmem:[#allocation2 + $0xd8] sm:$0xff]
    %v58 = vld [vmem:[#allocation2 + $0xe0] sm:$0xff]
    %v59 = vld [vmem:[#allocation2 + $0xe8] sm:$0xff]
    %v60 = vld [vmem:[#allocation2 + $0xf0] sm:$0xff]
    %v61 = vld [vmem:[#allocation2 + $0xf8] sm:$0xff]
    %v62 = vld [vmem:[#allocation2 + $0x100] sm:$0xff]
    %v63 = vld [vmem:[#allocation2 + $0x108] sm:$0xff]
    %v64 = vld [vmem:[#allocation2 + $0x110] sm:$0xff]
    %v65 = vld [vmem:[#allocation2 + $0x118] sm:$0xff]
    %v66 = vld [vmem:[#allocation2 + $0x120] sm:$0xff]
    %v67 = vld [vmem:[#allocation2 + $0x128] sm:$0xff]
    %v68 = vld [vmem:[#allocation2 + $0x130] sm:$0xff]
    %v69 = vld [vmem:[#allocation2 + $0x138] sm:$0xff]
    %v70 = vld [vmem:[#allocation2 + $0x140] sm:$0xff]
    %v71 = vld [vmem:[#allocation2 + $0x148] sm:$0xff]
    %v72 = vld [vmem:[#allocation2 + $0x150] sm:$0xff]
    %v73 = vld [vmem:[#allocation2 + $0x158] sm:$0xff]
    %v74 = vld [vmem:[#allocation2 + $0x160] sm:$0xff]
    %v75 = vld [vmem:[#allocation2 + $0x168] sm:$0xff]
    %v76 = vld [vmem:[#allocation2 + $0x170] sm:$0xff]
    %v77 = vld [vmem:[#allocation2 + $0x178] sm:$0xff]
    %v78 = vld [vmem:[#allocation2 + $0x180] sm:$0xff]
    %v79 = vld [vmem:[#allocation2 + $0x188] sm:$0xff]
    %v80 = vld [vmem:[#allocation2 + $0x190] sm:$0xff]
    %v81 = vld [vmem:[#allocation2 + $0x198] sm:$0xff]
    %v82 = vld [vmem:[#allocation2 + $0x1a0] sm:$0xff]
    %v83 = vld [vmem:[#allocation2 + $0x1a8] sm:$0xff]
    %v84 = vld [vmem:[#allocation2 + $0x1b0] sm:$0xff]
    %v85 = vld [vmem:[#allocation2 + $0x1b8] sm:$0xff]
    %v86 = vld [vmem:[#allocation2 + $0x1c0] sm:$0xff]
    %v87 = vld [vmem:[#allocation2 + $0x1c8] sm:$0xff]
    %v88 = vld [vmem:[#allocation2 + $0x1d0] sm:$0xff]
    %v89 = vld [vmem:[#allocation2 + $0x1d8] sm:$0xff]
    %v90 = vld [vmem:[#allocation2 + $0x1e0] sm:$0xff]
    %v91 = vld [vmem:[#allocation2 + $0x1e8] sm:$0xff]
    %v92 = vld [vmem:[#allocation2 + $0x1f0] sm:$0xff]
    %v93 = vld [vmem:[#allocation2 + $0x1f8] sm:$0xff]
    %v94 = vpack.c.bf16 %v31, %v30
    %v95 = vpack.c.bf16 %v33, %v32
    %v96 = vpack.c.bf16 %v35, %v34
    %v97 = vpack.c.bf16 %v37, %v36
    %v98 = vpack.c.bf16 %v39, %v38
    %v99 = vpack.c.bf16 %v41, %v40
    %v100 = vpack.c.bf16 %v43, %v42
    %v101 = vpack.c.bf16 %v45, %v44
    %v102 = vpack.c.bf16 %v47, %v46
    %v103 = vpack.c.bf16 %v49, %v48
    %v104 = vpack.c.bf16 %v51, %v50
    %v105 = vpack.c.bf16 %v53, %v52
    %v106 = vpack.c.bf16 %v55, %v54
    %v107 = vpack.c.bf16 %v57, %v56
    %v108 = vpack.c.bf16 %v59, %v58
    %v109 = vpack.c.bf16 %v61, %v60
    %v110 = vpack.c.bf16 %v63, %v62
    %v111 = vpack.c.bf16 %v65, %v64
    %v112 = vpack.c.bf16 %v67, %v66
    %v113 = vpack.c.bf16 %v69, %v68
    %v114 = vpack.c.bf16 %v71, %v70
    %v115 = vpack.c.bf16 %v73, %v72
    %v116 = vpack.c.bf16 %v75, %v74
    %v117 = vpack.c.bf16 %v77, %v76
    %v118 = vpack.c.bf16 %v79, %v78
    %v119 = vpack.c.bf16 %v81, %v80
    %v120 = vpack.c.bf16 %v83, %v82
    %v121 = vpack.c.bf16 %v85, %v84
    %v122 = vpack.c.bf16 %v87, %v86
    %v123 = vpack.c.bf16 %v89, %v88
    %v124 = vpack.c.bf16 %v91, %v90
    %v125 = vpack.c.bf16 %v93, %v92
    %v126 = vld [vmem:[%s1] sm:$0xf]
    %v127 = vld [vmem:[%s1 + $0x4] sm:$0xf]
    %v128 = vld [vmem:[%s1 + $0x8] sm:$0xf]
    %v129 = vld [vmem:[%s1 + $0xc] sm:$0xf]
    %v130 = vld [vmem:[%s1 + $0x10] sm:$0xf]
    %v131 = vld [vmem:[%s1 + $0x14] sm:$0xf]
    %v138 = vunpack.c.l.b16 %v126
    %v139 = vunpack.c.l.b16 %v127
    %v140 = vunpack.c.l.b16 %v128
    %v141 = vunpack.c.l.b16 %v129
    %v142 = vunpack.c.l.b16 %v130
    %v143 = vunpack.c.l.b16 %v131
    %v144 = vpack.c.b16 %v139, %v138
    %v145 = vpack.c.b16 %v141, %v140
    %v146 = vpack.c.b16 %v143, %v142
    %vm150 = vcmask 392192
    %v152 = vsel %vm150, %v94, 0
    %v155 = vsel %vm150, %v95, 0
    %v158 = vsel %vm150, %v96, 0
    %v161 = vsel %vm150, %v97, 0
    %v164 = vsel %vm150, %v98, 0
    %v167 = vsel %vm150, %v99, 0
    %v170 = vsel %vm150, %v100, 0
    %v173 = vsel %vm150, %v101, 0
    %v176 = vsel %vm150, %v102, 0
    %v179 = vsel %vm150, %v103, 0
    %v182 = vsel %vm150, %v104, 0
    %v185 = vsel %vm150, %v105, 0
    %v188 = vsel %vm150, %v106, 0
    %v191 = vsel %vm150, %v107, 0
    %v194 = vsel %vm150, %v108, 0
    %v197 = vsel %vm150, %v109, 0
    %v200 = vsel %vm150, %v110, 0
    %v203 = vsel %vm150, %v111, 0
    %v206 = vsel %vm150, %v112, 0
    %v209 = vsel %vm150, %v113, 0
    %v212 = vsel %vm150, %v114, 0
    %v215 = vsel %vm150, %v115, 0
    %v218 = vsel %vm150, %v116, 0
    %v221 = vsel %vm150, %v117, 0
    %v224 = vsel %vm150, %v118, 0
    %v227 = vsel %vm150, %v119, 0
    %v230 = vsel %vm150, %v120, 0
    %v233 = vsel %vm150, %v121, 0
    %v236 = vsel %vm150, %v122, 0
    %v239 = vsel %vm150, %v123, 0
    %v242 = vsel %vm150, %v124, 0
    %v245 = vsel %vm150, %v125, 0
    %247 = vmatprep.subr.bf16.mxu0 0
    %248 = vmatpush1.bf16.msra.mxu0 %v144
    %249 = vmatprep.subr.bf16.mxu0 0
    %250 = vmatpush1.bf16.msra.mxu0 %v145
    %251 = vmatprep.subr.bf16.mxu0 0
    %252 = vmatpush1.bf16.msra.mxu0 %v146
    %253 = vmatprep.subr.bf16.mxu0 0
    %254 = vmatpush1.bf16.msra.mxu0 0
    %255 = vmatprep.subr.bf16.mxu0 0
    %256 = vmatpush1.bf16.msra.mxu0 0
    %257 = vmatprep.subr.bf16.mxu0 0
    %258 = vmatpush1.bf16.msra.mxu0 0
    %259 = vmatprep.subr.bf16.mxu0 0
    %260 = vmatpush1.bf16.msra.mxu0 0
    %261 = vmatprep.subr.bf16.mxu0 0
    %262 = vmatpush1.bf16.msra.mxu0 0
    %263 = vmatprep.subr.bf16.mxu0 0
    %264 = vmatpush1.bf16.msra.mxu0 0
    %265 = vmatprep.subr.bf16.mxu0 0
    %266 = vmatpush1.bf16.msra.mxu0 0
    %267 = vmatprep.subr.bf16.mxu0 0
    %268 = vmatpush1.bf16.msra.mxu0 0
    %269 = vmatprep.subr.bf16.mxu0 0
    %270 = vmatpush1.bf16.msra.mxu0 0
    %271 = vmatprep.subr.bf16.mxu0 0
    %272 = vmatpush1.bf16.msra.mxu0 0
    %273 = vmatprep.subr.bf16.mxu0 0
    %274 = vmatpush1.bf16.msra.mxu0 0
    %275 = vmatprep.subr.bf16.mxu0 0
    %276 = vmatpush1.bf16.msra.mxu0 0
    %277 = vmatprep.subr.bf16.mxu0 0
    %278 = vmatpush1.bf16.msra.mxu0 0
    %279 = vmatprep.mubr.bf16.mxu0 0
    %280 = vmatmul.mubr.bf16.gmra.mrb[0].mxu0 %v152
    %v281 = vpop.f32.mrb[0].mxu0
    %v282 = vadd.f32 0.0, %v281
    %v283 = vpop.f32.mrb[0].mxu0
    %v284 = vpop.f32.mrb[0].mxu0
    %v285 = vadd.f32 0.0, %v284
    %v286 = vpop.f32.mrb[0].mxu0
    %287 = vmatprep.mubr.bf16.mxu0 0
    %288 = vmatmul.mubr.bf16.gmra.mrb[0].mxu0 %v155
    %v289 = vpop.f32.mrb[0].mxu0
    %v290 = vadd.f32 0.0, %v289
    %v291 = vpop.f32.mrb[0].mxu0
    %v292 = vpop.f32.mrb[0].mxu0
    %v293 = vadd.f32 0.0, %v292
    %v294 = vpop.f32.mrb[0].mxu0
    %295 = vmatprep.mubr.bf16.mxu0 0
    %296 = vmatmul.mubr.bf16.gmra.mrb[0].mxu0 %v158
    %v297 = vpop.f32.mrb[0].mxu0
    %v298 = vadd.f32 0.0, %v297
    %v299 = vpop.f32.mrb[0].mxu0
    %v300 = vpop.f32.mrb[0].mxu0
    %v301 = vadd.f32 0.0, %v300
    %v302 = vpop.f32.mrb[0].mxu0
    %303 = vmatprep.mubr.bf16.mxu0 0
    %304 = vmatmul.mubr.bf16.gmra.mrb[0].mxu0 %v161
    %v305 = vpop.f32.mrb[0].mxu0
    %v306 = vadd.f32 0.0, %v305
    %v307 = vpop.f32.mrb[0].mxu0
    %v308 = vpop.f32.mrb[0].mxu0
    %v309 = vadd.f32 0.0, %v308
    %v310 = vpop.f32.mrb[0].mxu0
    %311 = vmatprep.mubr.bf16.mxu0 0
    %312 = vmatmul.mubr.bf16.gmra.mrb[0].mxu0 %v164
    %v313 = vpop.f32.mrb[0].mxu0
    %v314 = vadd.f32 0.0, %v313
    %v315 = vpop.f32.mrb[0].mxu0
    %v316 = vpop.f32.mrb[0].mxu0
    %v317 = vadd.f32 0.0, %v316
    %v318 = vpop.f32.mrb[0].mxu0
    %319 = vmatprep.mubr.bf16.mxu0 0
    %320 = vmatmul.mubr.bf16.gmra.mrb[0].mxu0 %v167
    %v321 = vpop.f32.mrb[0].mxu0
    %v322 = vadd.f32 0.0, %v321
    %v323 = vpop.f32.mrb[0].mxu0
    %v324 = vpop.f32.mrb[0].mxu0
    %v325 = vadd.f32 0.0, %v324
    %v326 = vpop.f32.mrb[0].mxu0
    %327 = vmatprep.mubr.bf16.mxu0 0
    %328 = vmatmul.mubr.bf16.gmra.mrb[0].mxu0 %v170
    %v329 = vpop.f32.mrb[0].mxu0
    %v330 = vadd.f32 0.0, %v329
    %v331 = vpop.f32.mrb[0].mxu0
    %v332 = vpop.f32.mrb[0].mxu0
    %v333 = vadd.f32 0.0, %v332
    %v334 = vpop.f32.mrb[0].mxu0
    %335 = vmatprep.mubr.bf16.mxu0 0
    %336 = vmatmul.mubr.bf16.gmra.mrb[0].mxu0 %v173
    %v337 = vpop.f32.mrb[0].mxu0
    %v338 = vadd.f32 0.0, %v337
    %v339 = vpop.f32.mrb[0].mxu0
    %v340 = vpop.f32.mrb[0].mxu0
    %v341 = vadd.f32 0.0, %v340
    %v342 = vpop.f32.mrb[0].mxu0
    %343 = vmatprep.mubr.bf16.mxu0 0
    %344 = vmatmul.mubr.bf16.gmra.mrb[0].mxu0 %v176
    %v345 = vpop.f32.mrb[0].mxu0
    %v346 = vadd.f32 0.0, %v345
    %v347 = vpop.f32.mrb[0].mxu0
    %v348 = vpop.f32.mrb[0].mxu0
    %v349 = vadd.f32 0.0, %v348
    %v350 = vpop.f32.mrb[0].mxu0
    %351 = vmatprep.mubr.bf16.mxu0 0
    %352 = vmatmul.mubr.bf16.gmra.mrb[0].mxu0 %v179
    %v353 = vpop.f32.mrb[0].mxu0
    %v354 = vadd.f32 0.0, %v353
    %v355 = vpop.f32.mrb[0].mxu0
    %v356 = vpop.f32.mrb[0].mxu0
    %v357 = vadd.f32 0.0, %v356
    %v358 = vpop.f32.mrb[0].mxu0
    %359 = vmatprep.mubr.bf16.mxu0 0
    %360 = vmatmul.mubr.bf16.gmra.mrb[0].mxu0 %v182
    %v361 = vpop.f32.mrb[0].mxu0
    %v362 = vadd.f32 0.0, %v361
    %v363 = vpop.f32.mrb[0].mxu0
    %v364 = vpop.f32.mrb[0].mxu0
    %v365 = vadd.f32 0.0, %v364
    %v366 = vpop.f32.mrb[0].mxu0
    %367 = vmatprep.mubr.bf16.mxu0 0
    %368 = vmatmul.mubr.bf16.gmra.mrb[0].mxu0 %v185
    %v369 = vpop.f32.mrb[0].mxu0
    %v370 = vadd.f32 0.0, %v369
    %v371 = vpop.f32.mrb[0].mxu0
    %v372 = vpop.f32.mrb[0].mxu0
    %v373 = vadd.f32 0.0, %v372
    %v374 = vpop.f32.mrb[0].mxu0
    %375 = vmatprep.mubr.bf16.mxu0 0
    %376 = vmatmul.mubr.bf16.gmra.mrb[0].mxu0 %v188
    %v377 = vpop.f32.mrb[0].mxu0
    %v378 = vadd.f32 0.0, %v377
    %v379 = vpop.f32.mrb[0].mxu0
    %v380 = vpop.f32.mrb[0].mxu0
    %v381 = vadd.f32 0.0, %v380
    %v382 = vpop.f32.mrb[0].mxu0
    %383 = vmatprep.mubr.bf16.mxu0 0
    %384 = vmatmul.mubr.bf16.gmra.mrb[0].mxu0 %v191
    %v385 = vpop.f32.mrb[0].mxu0
    %v386 = vadd.f32 0.0, %v385
    %v387 = vpop.f32.mrb[0].mxu0
    %v388 = vpop.f32.mrb[0].mxu0
    %v389 = vadd.f32 0.0, %v388
    %v390 = vpop.f32.mrb[0].mxu0
    %391 = vmatprep.mubr.bf16.mxu0 0
    %392 = vmatmul.mubr.bf16.gmra.mrb[0].mxu0 %v194
    %v393 = vpop.f32.mrb[0].mxu0
    %v394 = vadd.f32 0.0, %v393
    %v395 = vpop.f32.mrb[0].mxu0
    %v396 = vpop.f32.mrb[0].mxu0
    %v397 = vadd.f32 0.0, %v396
    %v398 = vpop.f32.mrb[0].mxu0
    %399 = vmatprep.mubr.bf16.mxu0 0
    %400 = vmatmul.mubr.bf16.gmra.mrb[0].mxu0 %v197
    %v401 = vpop.f32.mrb[0].mxu0
    %v402 = vadd.f32 0.0, %v401
    %v403 = vpop.f32.mrb[0].mxu0
    %v404 = vpop.f32.mrb[0].mxu0
    %v405 = vadd.f32 0.0, %v404
    %v406 = vpop.f32.mrb[0].mxu0
    %407 = vmatprep.mubr.bf16.mxu0 0
    %408 = vmatmul.mubr.bf16.gmra.mrb[0].mxu0 %v200
    %v409 = vpop.f32.mrb[0].mxu0
    %v410 = vadd.f32 0.0, %v409
    %v411 = vpop.f32.mrb[0].mxu0
    %v412 = vpop.f32.mrb[0].mxu0
    %v413 = vadd.f32 0.0, %v412
    %v414 = vpop.f32.mrb[0].mxu0
    %415 = vmatprep.mubr.bf16.mxu0 0
    %416 = vmatmul.mubr.bf16.gmra.mrb[0].mxu0 %v203
    %v417 = vpop.f32.mrb[0].mxu0
    %v418 = vadd.f32 0.0, %v417
    %v419 = vpop.f32.mrb[0].mxu0
    %v420 = vpop.f32.mrb[0].mxu0
    %v421 = vadd.f32 0.0, %v420
    %v422 = vpop.f32.mrb[0].mxu0
    %423 = vmatprep.mubr.bf16.mxu0 0
    %424 = vmatmul.mubr.bf16.gmra.mrb[0].mxu0 %v206
    %v425 = vpop.f32.mrb[0].mxu0
    %v426 = vadd.f32 0.0, %v425
    %v427 = vpop.f32.mrb[0].mxu0
    %v428 = vpop.f32.mrb[0].mxu0
    %v429 = vadd.f32 0.0, %v428
    %v430 = vpop.f32.mrb[0].mxu0
    %431 = vmatprep.mubr.bf16.mxu0 0
    %432 = vmatmul.mubr.bf16.gmra.mrb[0].mxu0 %v209
    %v433 = vpop.f32.mrb[0].mxu0
    %v434 = vadd.f32 0.0, %v433
    %v435 = vpop.f32.mrb[0].mxu0
    %v436 = vpop.f32.mrb[0].mxu0
    %v437 = vadd.f32 0.0, %v436
    %v438 = vpop.f32.mrb[0].mxu0
    %439 = vmatprep.mubr.bf16.mxu0 0
    %440 = vmatmul.mubr.bf16.gmra.mrb[0].mxu0 %v212
    %v441 = vpop.f32.mrb[0].mxu0
    %v442 = vadd.f32 0.0, %v441
    %v443 = vpop.f32.mrb[0].mxu0
    %v444 = vpop.f32.mrb[0].mxu0
    %v445 = vadd.f32 0.0, %v444
    %v446 = vpop.f32.mrb[0].mxu0
    %447 = vmatprep.mubr.bf16.mxu0 0
    %448 = vmatmul.mubr.bf16.gmra.mrb[0].mxu0 %v215
    %v449 = vpop.f32.mrb[0].mxu0
    %v450 = vadd.f32 0.0, %v449
    %v451 = vpop.f32.mrb[0].mxu0
    %v452 = vpop.f32.mrb[0].mxu0
    %v453 = vadd.f32 0.0, %v452
    %v454 = vpop.f32.mrb[0].mxu0
    %455 = vmatprep.mubr.bf16.mxu0 0
    %456 = vmatmul.mubr.bf16.gmra.mrb[0].mxu0 %v218
    %v457 = vpop.f32.mrb[0].mxu0
    %v458 = vadd.f32 0.0, %v457
    %v459 = vpop.f32.mrb[0].mxu0
    %v460 = vpop.f32.mrb[0].mxu0
    %v461 = vadd.f32 0.0, %v460
    %v462 = vpop.f32.mrb[0].mxu0
    %463 = vmatprep.mubr.bf16.mxu0 0
    %464 = vmatmul.mubr.bf16.gmra.mrb[0].mxu0 %v221
    %v465 = vpop.f32.mrb[0].mxu0
    %v466 = vadd.f32 0.0, %v465
    %v467 = vpop.f32.mrb[0].mxu0
    %v468 = vpop.f32.mrb[0].mxu0
    %v469 = vadd.f32 0.0, %v468
    %v470 = vpop.f32.mrb[0].mxu0
    %471 = vmatprep.mubr.bf16.mxu0 0
    %472 = vmatmul.mubr.bf16.gmra.mrb[0].mxu0 %v224
    %v473 = vpop.f32.mrb[0].mxu0
    %v474 = vadd.f32 0.0, %v473
    %v475 = vpop.f32.mrb[0].mxu0
    %v476 = vpop.f32.mrb[0].mxu0
    %v477 = vadd.f32 0.0, %v476
    %v478 = vpop.f32.mrb[0].mxu0
    %479 = vmatprep.mubr.bf16.mxu0 0
    %480 = vmatmul.mubr.bf16.gmra.mrb[0].mxu0 %v227
    %v481 = vpop.f32.mrb[0].mxu0
    %v482 = vadd.f32 0.0, %v481
    %v483 = vpop.f32.mrb[0].mxu0
    %v484 = vpop.f32.mrb[0].mxu0
    %v485 = vadd.f32 0.0, %v484
    %v486 = vpop.f32.mrb[0].mxu0
    %487 = vmatprep.mubr.bf16.mxu0 0
    %488 = vmatmul.mubr.bf16.gmra.mrb[0].mxu0 %v230
    %v489 = vpop.f32.mrb[0].mxu0
    %v490 = vadd.f32 0.0, %v489
    %v491 = vpop.f32.mrb[0].mxu0
    %v492 = vpop.f32.mrb[0].mxu0
    %v493 = vadd.f32 0.0, %v492
    %v494 = vpop.f32.mrb[0].mxu0
    %495 = vmatprep.mubr.bf16.mxu0 0
    %496 = vmatmul.mubr.bf16.gmra.mrb[0].mxu0 %v233
    %v497 = vpop.f32.mrb[0].mxu0
    %v498 = vadd.f32 0.0, %v497
    %v499 = vpop.f32.mrb[0].mxu0
    %v500 = vpop.f32.mrb[0].mxu0
    %v501 = vadd.f32 0.0, %v500
    %v502 = vpop.f32.mrb[0].mxu0
    %503 = vmatprep.mubr.bf16.mxu0 0
    %504 = vmatmul.mubr.bf16.gmra.mrb[0].mxu0 %v236
    %v505 = vpop.f32.mrb[0].mxu0
    %v506 = vadd.f32 0.0, %v505
    %v507 = vpop.f32.mrb[0].mxu0
    %v508 = vpop.f32.mrb[0].mxu0
    %v509 = vadd.f32 0.0, %v508
    %v510 = vpop.f32.mrb[0].mxu0
    %511 = vmatprep.mubr.bf16.mxu0 0
    %512 = vmatmul.mubr.bf16.gmra.mrb[0].mxu0 %v239
    %v513 = vpop.f32.mrb[0].mxu0
    %v514 = vadd.f32 0.0, %v513
    %v515 = vpop.f32.mrb[0].mxu0
    %v516 = vpop.f32.mrb[0].mxu0
    %v517 = vadd.f32 0.0, %v516
    %v518 = vpop.f32.mrb[0].mxu0
    %519 = vmatprep.mubr.bf16.mxu0 0
    %520 = vmatmul.mubr.bf16.gmra.mrb[0].mxu0 %v242
    %v521 = vpop.f32.mrb[0].mxu0
    %v522 = vadd.f32 0.0, %v521
    %v523 = vpop.f32.mrb[0].mxu0
    %v524 = vpop.f32.mrb[0].mxu0
    %v525 = vadd.f32 0.0, %v524
    %v526 = vpop.f32.mrb[0].mxu0
    %527 = vmatprep.mubr.bf16.mxu0 0
    %528 = vmatmul.mubr.bf16.gmra.mrb[0].mxu0 %v245
    %v529 = vpop.f32.mrb[0].mxu0
    %v530 = vadd.f32 0.0, %v529
    %v531 = vpop.f32.mrb[0].mxu0
    %v532 = vpop.f32.mrb[0].mxu0
    %v533 = vadd.f32 0.0, %v532
    %v534 = vpop.f32.mrb[0].mxu0
    %535 = vdwg.mxu0
    %v536 = vmax.f32 %v282, 0.0
    %v537 = vmax.f32 %v285, 0.0
    %v538 = vmax.f32 %v290, 0.0
    %v539 = vmax.f32 %v293, 0.0
    %v540 = vmax.f32 %v298, 0.0
    %v541 = vmax.f32 %v301, 0.0
    %v542 = vmax.f32 %v306, 0.0
    %v543 = vmax.f32 %v309, 0.0
    %v544 = vmax.f32 %v314, 0.0
    %v545 = vmax.f32 %v317, 0.0
    %v546 = vmax.f32 %v322, 0.0
    %v547 = vmax.f32 %v325, 0.0
    %v548 = vmax.f32 %v330, 0.0
    %v549 = vmax.f32 %v333, 0.0
    %v550 = vmax.f32 %v338, 0.0
    %v551 = vmax.f32 %v341, 0.0
    %v552 = vmax.f32 %v346, 0.0
    %v553 = vmax.f32 %v349, 0.0
    %v554 = vmax.f32 %v354, 0.0
    %v555 = vmax.f32 %v357, 0.0
    %v556 = vmax.f32 %v362, 0.0
    %v557 = vmax.f32 %v365, 0.0
    %v558 = vmax.f32 %v370, 0.0
    %v559 = vmax.f32 %v373, 0.0
    %v560 = vmax.f32 %v378, 0.0
    %v561 = vmax.f32 %v381, 0.0
    %v562 = vmax.f32 %v386, 0.0
    %v563 = vmax.f32 %v389, 0.0
    %v564 = vmax.f32 %v394, 0.0
    %v565 = vmax.f32 %v397, 0.0
    %v566 = vmax.f32 %v402, 0.0
    %v567 = vmax.f32 %v405, 0.0
    %v568 = vmax.f32 %v410, 0.0
    %v569 = vmax.f32 %v413, 0.0
    %v570 = vmax.f32 %v418, 0.0
    %v571 = vmax.f32 %v421, 0.0
    %v572 = vmax.f32 %v426, 0.0
    %v573 = vmax.f32 %v429, 0.0
    %v574 = vmax.f32 %v434, 0.0
    %v575 = vmax.f32 %v437, 0.0
    %v576 = vmax.f32 %v442, 0.0
    %v577 = vmax.f32 %v445, 0.0
    %v578 = vmax.f32 %v450, 0.0
    %v579 = vmax.f32 %v453, 0.0
    %v580 = vmax.f32 %v458, 0.0
    %v581 = vmax.f32 %v461, 0.0
    %v582 = vmax.f32 %v466, 0.0
    %v583 = vmax.f32 %v469, 0.0
    %v584 = vmax.f32 %v474, 0.0
    %v585 = vmax.f32 %v477, 0.0
    %v586 = vmax.f32 %v482, 0.0
    %v587 = vmax.f32 %v485, 0.0
    %v588 = vmax.f32 %v490, 0.0
    %v589 = vmax.f32 %v493, 0.0
    %v590 = vmax.f32 %v498, 0.0
    %v591 = vmax.f32 %v501, 0.0
    %v592 = vmax.f32 %v506, 0.0
    %v593 = vmax.f32 %v509, 0.0
    %v594 = vmax.f32 %v514, 0.0
    %v595 = vmax.f32 %v517, 0.0
    %v596 = vmax.f32 %v522, 0.0
    %v597 = vmax.f32 %v525, 0.0
    %v598 = vmax.f32 %v530, 0.0
    %v599 = vmax.f32 %v533, 0.0
    %v600 = vpack.c.bf16 %v537, %v536
    %v601 = vpack.c.bf16 %v539, %v538
    %v602 = vpack.c.bf16 %v541, %v540
    %v603 = vpack.c.bf16 %v543, %v542
    %v604 = vpack.c.bf16 %v545, %v544
    %v605 = vpack.c.bf16 %v547, %v546
    %v606 = vpack.c.bf16 %v549, %v548
    %v607 = vpack.c.bf16 %v551, %v550
    %v608 = vpack.c.bf16 %v553, %v552
    %v609 = vpack.c.bf16 %v555, %v554
    %v610 = vpack.c.bf16 %v557, %v556
    %v611 = vpack.c.bf16 %v559, %v558
    %v612 = vpack.c.bf16 %v561, %v560
    %v613 = vpack.c.bf16 %v563, %v562
    %v614 = vpack.c.bf16 %v565, %v564
    %v615 = vpack.c.bf16 %v567, %v566
    %v616 = vpack.c.bf16 %v569, %v568
    %v617 = vpack.c.bf16 %v571, %v570
    %v618 = vpack.c.bf16 %v573, %v572
    %v619 = vpack.c.bf16 %v575, %v574
    %v620 = vpack.c.bf16 %v577, %v576
    %v621 = vpack.c.bf16 %v579, %v578
    %v622 = vpack.c.bf16 %v581, %v580
    %v623 = vpack.c.bf16 %v583, %v582
    %v624 = vpack.c.bf16 %v585, %v584
    %v625 = vpack.c.bf16 %v587, %v586
    %v626 = vpack.c.bf16 %v589, %v588
    %v627 = vpack.c.bf16 %v591, %v590
    %v628 = vpack.c.bf16 %v593, %v592
    %v629 = vpack.c.bf16 %v595, %v594
    %v630 = vpack.c.bf16 %v597, %v596
    %v631 = vpack.c.bf16 %v599, %v598
    %v632 = vld [vmem:[%s2] sm:$0xf]
    %v633 = vld [vmem:[%s2 + $0x4] sm:$0xf]
    %v634 = vld [vmem:[%s2 + $0x8] sm:$0xf]
    %v635 = vld [vmem:[%s2 + $0xc] sm:$0xf]
    %v636 = vld [vmem:[%s2 + $0x10] sm:$0xf]
    %v637 = vld [vmem:[%s2 + $0x14] sm:$0xf]
    %v638 = vld [vmem:[%s2 + $0x18] sm:$0xf]
    %v639 = vld [vmem:[%s2 + $0x1c] sm:$0xf]
    %v640 = vld [vmem:[%s2 + $0x20] sm:$0xf]
    %v641 = vld [vmem:[%s2 + $0x24] sm:$0xf]
    %v642 = vld [vmem:[%s2 + $0x28] sm:$0xf]
    %v643 = vld [vmem:[%s2 + $0x2c] sm:$0xf]
    %v644 = vld [vmem:[%s2 + $0x30] sm:$0xf]
    %v645 = vld [vmem:[%s2 + $0x34] sm:$0xf]
    %v646 = vld [vmem:[%s2 + $0x38] sm:$0xf]
    %v647 = vld [vmem:[%s2 + $0x3c] sm:$0xf]
    %v664 = vunpack.c.l.b16 %v632
    %v665 = vunpack.c.l.b16 %v633
    %v666 = vunpack.c.l.b16 %v634
    %v667 = vunpack.c.l.b16 %v635
    %v668 = vunpack.c.l.b16 %v636
    %v669 = vunpack.c.l.b16 %v637
    %v670 = vunpack.c.l.b16 %v638
    %v671 = vunpack.c.l.b16 %v639
    %v672 = vunpack.c.l.b16 %v640
    %v673 = vunpack.c.l.b16 %v641
    %v674 = vunpack.c.l.b16 %v642
    %v675 = vunpack.c.l.b16 %v643
    %v676 = vunpack.c.l.b16 %v644
    %v677 = vunpack.c.l.b16 %v645
    %v678 = vunpack.c.l.b16 %v646
    %v679 = vunpack.c.l.b16 %v647
    %v680 = vpack.c.b16 %v665, %v664
    %v681 = vpack.c.b16 %v667, %v666
    %v682 = vpack.c.b16 %v669, %v668
    %v683 = vpack.c.b16 %v671, %v670
    %v684 = vpack.c.b16 %v673, %v672
    %v685 = vpack.c.b16 %v675, %v674
    %v686 = vpack.c.b16 %v677, %v676
    %v687 = vpack.c.b16 %v679, %v678
    %696 = vmatprep.subr.bf16.mxu0 0
    %697 = vmatpush1.bf16.msra.mxu0 %v680
    %698 = vmatprep.subr.bf16.mxu0 0
    %699 = vmatpush1.bf16.msra.mxu0 %v681
    %700 = vmatprep.subr.bf16.mxu0 0
    %701 = vmatpush1.bf16.msra.mxu0 %v682
    %702 = vmatprep.subr.bf16.mxu0 0
    %703 = vmatpush1.bf16.msra.mxu0 %v683
    %704 = vmatprep.subr.bf16.mxu0 0
    %705 = vmatpush1.bf16.msra.mxu0 %v684
    %706 = vmatprep.subr.bf16.mxu0 0
    %707 = vmatpush1.bf16.msra.mxu0 %v685
    %708 = vmatprep.subr.bf16.mxu0 0
    %709 = vmatpush1.bf16.msra.mxu0 %v686
    %710 = vmatprep.subr.bf16.mxu0 0
    %711 = vmatpush1.bf16.msra.mxu0 %v687
    %712 = vmatprep.subr.bf16.mxu0 0
    %713 = vmatpush1.bf16.msra.mxu0 0
    %714 = vmatprep.subr.bf16.mxu0 0
    %715 = vmatpush1.bf16.msra.mxu0 0
    %716 = vmatprep.subr.bf16.mxu0 0
    %717 = vmatpush1.bf16.msra.mxu0 0
    %718 = vmatprep.subr.bf16.mxu0 0
    %719 = vmatpush1.bf16.msra.mxu0 0
    %720 = vmatprep.subr.bf16.mxu0 0
    %721 = vmatpush1.bf16.msra.mxu0 0
    %722 = vmatprep.subr.bf16.mxu0 0
    %723 = vmatpush1.bf16.msra.mxu0 0
    %724 = vmatprep.subr.bf16.mxu0 0
    %725 = vmatpush1.bf16.msra.mxu0 0
    %726 = vmatprep.subr.bf16.mxu0 0
    %727 = vmatpush1.bf16.msra.mxu0 0
    %728 = vmatprep.mubr.bf16.mxu0 0
    %729 = vmatmul.mubr.bf16.gmra.mrb[0].mxu0 %v600
    %v730 = vpop.f32.mrb[0].mxu0
    %v731 = vadd.f32 0.0, %v730
    %v732 = vpop.f32.mrb[0].mxu0
    %v733 = vpop.f32.mrb[0].mxu0
    %v734 = vadd.f32 0.0, %v733
    %v735 = vpop.f32.mrb[0].mxu0
    %736 = vmatprep.mubr.bf16.mxu0 0
    %737 = vmatmul.mubr.bf16.gmra.mrb[0].mxu0 %v601
    %v738 = vpop.f32.mrb[0].mxu0
    %v739 = vadd.f32 0.0, %v738
    %v740 = vpop.f32.mrb[0].mxu0
    %v741 = vpop.f32.mrb[0].mxu0
    %v742 = vadd.f32 0.0, %v741
    %v743 = vpop.f32.mrb[0].mxu0
    %744 = vmatprep.mubr.bf16.mxu0 0
    %745 = vmatmul.mubr.bf16.gmra.mrb[0].mxu0 %v602
    %v746 = vpop.f32.mrb[0].mxu0
    %v747 = vadd.f32 0.0, %v746
    %v748 = vpop.f32.mrb[0].mxu0
    %v749 = vpop.f32.mrb[0].mxu0
    %v750 = vadd.f32 0.0, %v749
    %v751 = vpop.f32.mrb[0].mxu0
    %752 = vmatprep.mubr.bf16.mxu0 0
    %753 = vmatmul.mubr.bf16.gmra.mrb[0].mxu0 %v603
    %v754 = vpop.f32.mrb[0].mxu0
    %v755 = vadd.f32 0.0, %v754
    %v756 = vpop.f32.mrb[0].mxu0
    %v757 = vpop.f32.mrb[0].mxu0
    %v758 = vadd.f32 0.0, %v757
    %v759 = vpop.f32.mrb[0].mxu0
    %760 = vmatprep.mubr.bf16.mxu0 0
    %761 = vmatmul.mubr.bf16.gmra.mrb[0].mxu0 %v604
    %v762 = vpop.f32.mrb[0].mxu0
    %v763 = vadd.f32 0.0, %v762
    %v764 = vpop.f32.mrb[0].mxu0
    %v765 = vpop.f32.mrb[0].mxu0
    %v766 = vadd.f32 0.0, %v765
    %v767 = vpop.f32.mrb[0].mxu0
    %768 = vmatprep.mubr.bf16.mxu0 0
    %769 = vmatmul.mubr.bf16.gmra.mrb[0].mxu0 %v605
    %v770 = vpop.f32.mrb[0].mxu0
    %v771 = vadd.f32 0.0, %v770
    %v772 = vpop.f32.mrb[0].mxu0
    %v773 = vpop.f32.mrb[0].mxu0
    %v774 = vadd.f32 0.0, %v773
    %v775 = vpop.f32.mrb[0].mxu0
    %776 = vmatprep.mubr.bf16.mxu0 0
    %777 = vmatmul.mubr.bf16.gmra.mrb[0].mxu0 %v606
    %v778 = vpop.f32.mrb[0].mxu0
    %v779 = vadd.f32 0.0, %v778
    %v780 = vpop.f32.mrb[0].mxu0
    %v781 = vpop.f32.mrb[0].mxu0
    %v782 = vadd.f32 0.0, %v781
    %v783 = vpop.f32.mrb[0].mxu0
    %784 = vmatprep.mubr.bf16.mxu0 0
    %785 = vmatmul.mubr.bf16.gmra.mrb[0].mxu0 %v607
    %v786 = vpop.f32.mrb[0].mxu0
    %v787 = vadd.f32 0.0, %v786
    %v788 = vpop.f32.mrb[0].mxu0
    %v789 = vpop.f32.mrb[0].mxu0
    %v790 = vadd.f32 0.0, %v789
    %v791 = vpop.f32.mrb[0].mxu0
    %792 = vmatprep.mubr.bf16.mxu0 0
    %793 = vmatmul.mubr.bf16.gmra.mrb[0].mxu0 %v608
    %v794 = vpop.f32.mrb[0].mxu0
    %v795 = vadd.f32 0.0, %v794
    %v796 = vpop.f32.mrb[0].mxu0
    %v797 = vpop.f32.mrb[0].mxu0
    %v798 = vadd.f32 0.0, %v797
    %v799 = vpop.f32.mrb[0].mxu0
    %800 = vmatprep.mubr.bf16.mxu0 0
    %801 = vmatmul.mubr.bf16.gmra.mrb[0].mxu0 %v609
    %v802 = vpop.f32.mrb[0].mxu0
    %v803 = vadd.f32 0.0, %v802
    %v804 = vpop.f32.mrb[0].mxu0
    %v805 = vpop.f32.mrb[0].mxu0
    %v806 = vadd.f32 0.0, %v805
    %v807 = vpop.f32.mrb[0].mxu0
    %808 = vmatprep.mubr.bf16.mxu0 0
    %809 = vmatmul.mubr.bf16.gmra.mrb[0].mxu0 %v610
    %v810 = vpop.f32.mrb[0].mxu0
    %v811 = vadd.f32 0.0, %v810
    %v812 = vpop.f32.mrb[0].mxu0
    %v813 = vpop.f32.mrb[0].mxu0
    %v814 = vadd.f32 0.0, %v813
    %v815 = vpop.f32.mrb[0].mxu0
    %816 = vmatprep.mubr.bf16.mxu0 0
    %817 = vmatmul.mubr.bf16.gmra.mrb[0].mxu0 %v611
    %v818 = vpop.f32.mrb[0].mxu0
    %v819 = vadd.f32 0.0, %v818
    %v820 = vpop.f32.mrb[0].mxu0
    %v821 = vpop.f32.mrb[0].mxu0
    %v822 = vadd.f32 0.0, %v821
    %v823 = vpop.f32.mrb[0].mxu0
    %824 = vmatprep.mubr.bf16.mxu0 0
    %825 = vmatmul.mubr.bf16.gmra.mrb[0].mxu0 %v612
    %v826 = vpop.f32.mrb[0].mxu0
    %v827 = vadd.f32 0.0, %v826
    %v828 = vpop.f32.mrb[0].mxu0
    %v829 = vpop.f32.mrb[0].mxu0
    %v830 = vadd.f32 0.0, %v829
    %v831 = vpop.f32.mrb[0].mxu0
    %832 = vmatprep.mubr.bf16.mxu0 0
    %833 = vmatmul.mubr.bf16.gmra.mrb[0].mxu0 %v613
    %v834 = vpop.f32.mrb[0].mxu0
    %v835 = vadd.f32 0.0, %v834
    %v836 = vpop.f32.mrb[0].mxu0
    %v837 = vpop.f32.mrb[0].mxu0
    %v838 = vadd.f32 0.0, %v837
    %v839 = vpop.f32.mrb[0].mxu0
    %840 = vmatprep.mubr.bf16.mxu0 0
    %841 = vmatmul.mubr.bf16.gmra.mrb[0].mxu0 %v614
    %v842 = vpop.f32.mrb[0].mxu0
    %v843 = vadd.f32 0.0, %v842
    %v844 = vpop.f32.mrb[0].mxu0
    %v845 = vpop.f32.mrb[0].mxu0
    %v846 = vadd.f32 0.0, %v845
    %v847 = vpop.f32.mrb[0].mxu0
    %848 = vmatprep.mubr.bf16.mxu0 0
    %849 = vmatmul.mubr.bf16.gmra.mrb[0].mxu0 %v615
    %v850 = vpop.f32.mrb[0].mxu0
    %v851 = vadd.f32 0.0, %v850
    %v852 = vpop.f32.mrb[0].mxu0
    %v853 = vpop.f32.mrb[0].mxu0
    %v854 = vadd.f32 0.0, %v853
    %v855 = vpop.f32.mrb[0].mxu0
    %856 = vmatprep.mubr.bf16.mxu0 0
    %857 = vmatmul.mubr.bf16.gmra.mrb[0].mxu0 %v616
    %v858 = vpop.f32.mrb[0].mxu0
    %v859 = vadd.f32 0.0, %v858
    %v860 = vpop.f32.mrb[0].mxu0
    %v861 = vpop.f32.mrb[0].mxu0
    %v862 = vadd.f32 0.0, %v861
    %v863 = vpop.f32.mrb[0].mxu0
    %864 = vmatprep.mubr.bf16.mxu0 0
    %865 = vmatmul.mubr.bf16.gmra.mrb[0].mxu0 %v617
    %v866 = vpop.f32.mrb[0].mxu0
    %v867 = vadd.f32 0.0, %v866
    %v868 = vpop.f32.mrb[0].mxu0
    %v869 = vpop.f32.mrb[0].mxu0
    %v870 = vadd.f32 0.0, %v869
    %v871 = vpop.f32.mrb[0].mxu0
    %872 = vmatprep.mubr.bf16.mxu0 0
    %873 = vmatmul.mubr.bf16.gmra.mrb[0].mxu0 %v618
    %v874 = vpop.f32.mrb[0].mxu0
    %v875 = vadd.f32 0.0, %v874
    %v876 = vpop.f32.mrb[0].mxu0
    %v877 = vpop.f32.mrb[0].mxu0
    %v878 = vadd.f32 0.0, %v877
    %v879 = vpop.f32.mrb[0].mxu0
    %880 = vmatprep.mubr.bf16.mxu0 0
    %881 = vmatmul.mubr.bf16.gmra.mrb[0].mxu0 %v619
    %v882 = vpop.f32.mrb[0].mxu0
    %v883 = vadd.f32 0.0, %v882
    %v884 = vpop.f32.mrb[0].mxu0
    %v885 = vpop.f32.mrb[0].mxu0
    %v886 = vadd.f32 0.0, %v885
    %v887 = vpop.f32.mrb[0].mxu0
    %888 = vmatprep.mubr.bf16.mxu0 0
    %889 = vmatmul.mubr.bf16.gmra.mrb[0].mxu0 %v620
    %v890 = vpop.f32.mrb[0].mxu0
    %v891 = vadd.f32 0.0, %v890
    %v892 = vpop.f32.mrb[0].mxu0
    %v893 = vpop.f32.mrb[0].mxu0
    %v894 = vadd.f32 0.0, %v893
    %v895 = vpop.f32.mrb[0].mxu0
    %896 = vmatprep.mubr.bf16.mxu0 0
    %897 = vmatmul.mubr.bf16.gmra.mrb[0].mxu0 %v621
    %v898 = vpop.f32.mrb[0].mxu0
    %v899 = vadd.f32 0.0, %v898
    %v900 = vpop.f32.mrb[0].mxu0
    %v901 = vpop.f32.mrb[0].mxu0
    %v902 = vadd.f32 0.0, %v901
    %v903 = vpop.f32.mrb[0].mxu0
    %904 = vmatprep.mubr.bf16.mxu0 0
    %905 = vmatmul.mubr.bf16.gmra.mrb[0].mxu0 %v622
    %v906 = vpop.f32.mrb[0].mxu0
    %v907 = vadd.f32 0.0, %v906
    %v908 = vpop.f32.mrb[0].mxu0
    %v909 = vpop.f32.mrb[0].mxu0
    %v910 = vadd.f32 0.0, %v909
    %v911 = vpop.f32.mrb[0].mxu0
    %912 = vmatprep.mubr.bf16.mxu0 0
    %913 = vmatmul.mubr.bf16.gmra.mrb[0].mxu0 %v623
    %v914 = vpop.f32.mrb[0].mxu0
    %v915 = vadd.f32 0.0, %v914
    %v916 = vpop.f32.mrb[0].mxu0
    %v917 = vpop.f32.mrb[0].mxu0
    %v918 = vadd.f32 0.0, %v917
    %v919 = vpop.f32.mrb[0].mxu0
    %920 = vmatprep.mubr.bf16.mxu0 0
    %921 = vmatmul.mubr.bf16.gmra.mrb[0].mxu0 %v624
    %v922 = vpop.f32.mrb[0].mxu0
    %v923 = vadd.f32 0.0, %v922
    %v924 = vpop.f32.mrb[0].mxu0
    %v925 = vpop.f32.mrb[0].mxu0
    %v926 = vadd.f32 0.0, %v925
    %v927 = vpop.f32.mrb[0].mxu0
    %928 = vmatprep.mubr.bf16.mxu0 0
    %929 = vmatmul.mubr.bf16.gmra.mrb[0].mxu0 %v625
    %v930 = vpop.f32.mrb[0].mxu0
    %v931 = vadd.f32 0.0, %v930
    %v932 = vpop.f32.mrb[0].mxu0
    %v933 = vpop.f32.mrb[0].mxu0
    %v934 = vadd.f32 0.0, %v933
    %v935 = vpop.f32.mrb[0].mxu0
    %936 = vmatprep.mubr.bf16.mxu0 0
    %937 = vmatmul.mubr.bf16.gmra.mrb[0].mxu0 %v626
    %v938 = vpop.f32.mrb[0].mxu0
    %v939 = vadd.f32 0.0, %v938
    %v940 = vpop.f32.mrb[0].mxu0
    %v941 = vpop.f32.mrb[0].mxu0
    %v942 = vadd.f32 0.0, %v941
    %v943 = vpop.f32.mrb[0].mxu0
    %944 = vmatprep.mubr.bf16.mxu0 0
    %945 = vmatmul.mubr.bf16.gmra.mrb[0].mxu0 %v627
    %v946 = vpop.f32.mrb[0].mxu0
    %v947 = vadd.f32 0.0, %v946
    %v948 = vpop.f32.mrb[0].mxu0
    %v949 = vpop.f32.mrb[0].mxu0
    %v950 = vadd.f32 0.0, %v949
    %v951 = vpop.f32.mrb[0].mxu0
    %952 = vmatprep.mubr.bf16.mxu0 0
    %953 = vmatmul.mubr.bf16.gmra.mrb[0].mxu0 %v628
    %v954 = vpop.f32.mrb[0].mxu0
    %v955 = vadd.f32 0.0, %v954
    %v956 = vpop.f32.mrb[0].mxu0
    %v957 = vpop.f32.mrb[0].mxu0
    %v958 = vadd.f32 0.0, %v957
    %v959 = vpop.f32.mrb[0].mxu0
    %960 = vmatprep.mubr.bf16.mxu0 0
    %961 = vmatmul.mubr.bf16.gmra.mrb[0].mxu0 %v629
    %v962 = vpop.f32.mrb[0].mxu0
    %v963 = vadd.f32 0.0, %v962
    %v964 = vpop.f32.mrb[0].mxu0
    %v965 = vpop.f32.mrb[0].mxu0
    %v966 = vadd.f32 0.0, %v965
    %v967 = vpop.f32.mrb[0].mxu0
    %968 = vmatprep.mubr.bf16.mxu0 0
    %969 = vmatmul.mubr.bf16.gmra.mrb[0].mxu0 %v630
    %v970 = vpop.f32.mrb[0].mxu0
    %v971 = vadd.f32 0.0, %v970
    %v972 = vpop.f32.mrb[0].mxu0
    %v973 = vpop.f32.mrb[0].mxu0
    %v974 = vadd.f32 0.0, %v973
    %v975 = vpop.f32.mrb[0].mxu0
    %976 = vmatprep.mubr.bf16.mxu0 0
    %977 = vmatmul.mubr.bf16.gmra.mrb[0].mxu0 %v631
    %v978 = vpop.f32.mrb[0].mxu0
    %v979 = vadd.f32 0.0, %v978
    %v980 = vpop.f32.mrb[0].mxu0
    %v981 = vpop.f32.mrb[0].mxu0
    %v982 = vadd.f32 0.0, %v981
    %v983 = vpop.f32.mrb[0].mxu0
    %984 = vdwg.mxu0
    %vm985 = vcmask 130048
    %986 = vst.msk [vmem:[#allocation5] sm:$0xff] %vm985, %v731
    %987 = vst.msk [vmem:[#allocation5 + $0x8] sm:$0xff] %vm985, %v734
    %988 = vst.msk [vmem:[#allocation5 + $0x10] sm:$0xff] %vm985, %v739
    %989 = vst.msk [vmem:[#allocation5 + $0x18] sm:$0xff] %vm985, %v742
    %990 = vst.msk [vmem:[#allocation5 + $0x20] sm:$0xff] %vm985, %v747
    %991 = vst.msk [vmem:[#allocation5 + $0x28] sm:$0xff] %vm985, %v750
    %992 = vst.msk [vmem:[#allocation5 + $0x30] sm:$0xff] %vm985, %v755
    %993 = vst.msk [vmem:[#allocation5 + $0x38] sm:$0xff] %vm985, %v758
    %994 = vst.msk [vmem:[#allocation5 + $0x40] sm:$0xff] %vm985, %v763
    %995 = vst.msk [vmem:[#allocation5 + $0x48] sm:$0xff] %vm985, %v766
    %996 = vst.msk [vmem:[#allocation5 + $0x50] sm:$0xff] %vm985, %v771
    %997 = vst.msk [vmem:[#allocation5 + $0x58] sm:$0xff] %vm985, %v774
    %998 = vst.msk [vmem:[#allocation5 + $0x60] sm:$0xff] %vm985, %v779
    %999 = vst.msk [vmem:[#allocation5 + $0x68] sm:$0xff] %vm985, %v782
    %1000 = vst.msk [vmem:[#allocation5 + $0x70] sm:$0xff] %vm985, %v787
    %1001 = vst.msk [vmem:[#allocation5 + $0x78] sm:$0xff] %vm985, %v790
    %1002 = vst.msk [vmem:[#allocation5 + $0x80] sm:$0xff] %vm985, %v795
    %1003 = vst.msk [vmem:[#allocation5 + $0x88] sm:$0xff] %vm985, %v798
    %1004 = vst.msk [vmem:[#allocation5 + $0x90] sm:$0xff] %vm985, %v803
    %1005 = vst.msk [vmem:[#allocation5 + $0x98] sm:$0xff] %vm985, %v806
    %1006 = vst.msk [vmem:[#allocation5 + $0xa0] sm:$0xff] %vm985, %v811
    %1007 = vst.msk [vmem:[#allocation5 + $0xa8] sm:$0xff] %vm985, %v814
    %1008 = vst.msk [vmem:[#allocation5 + $0xb0] sm:$0xff] %vm985, %v819
    %1009 = vst.msk [vmem:[#allocation5 + $0xb8] sm:$0xff] %vm985, %v822
    %1010 = vst.msk [vmem:[#allocation5 + $0xc0] sm:$0xff] %vm985, %v827
    %1011 = vst.msk [vmem:[#allocation5 + $0xc8] sm:$0xff] %vm985, %v830
    %1012 = vst.msk [vmem:[#allocation5 + $0xd0] sm:$0xff] %vm985, %v835
    %1013 = vst.msk [vmem:[#allocation5 + $0xd8] sm:$0xff] %vm985, %v838
    %1014 = vst.msk [vmem:[#allocation5 + $0xe0] sm:$0xff] %vm985, %v843
    %1015 = vst.msk [vmem:[#allocation5 + $0xe8] sm:$0xff] %vm985, %v846
    %1016 = vst.msk [vmem:[#allocation5 + $0xf0] sm:$0xff] %vm985, %v851
    %1017 = vst.msk [vmem:[#allocation5 + $0xf8] sm:$0xff] %vm985, %v854
    %1018 = vst.msk [vmem:[#allocation5 + $0x100] sm:$0xff] %vm985, %v859
    %1019 = vst.msk [vmem:[#allocation5 + $0x108] sm:$0xff] %vm985, %v862
    %1020 = vst.msk [vmem:[#allocation5 + $0x110] sm:$0xff] %vm985, %v867
    %1021 = vst.msk [vmem:[#allocation5 + $0x118] sm:$0xff] %vm985, %v870
    %1022 = vst.msk [vmem:[#allocation5 + $0x120] sm:$0xff] %vm985, %v875
    %1023 = vst.msk [vmem:[#allocation5 + $0x128] sm:$0xff] %vm985, %v878
    %1024 = vst.msk [vmem:[#allocation5 + $0x130] sm:$0xff] %vm985, %v883
    %1025 = vst.msk [vmem:[#allocation5 + $0x138] sm:$0xff] %vm985, %v886
    %1026 = vst.msk [vmem:[#allocation5 + $0x140] sm:$0xff] %vm985, %v891
    %1027 = vst.msk [vmem:[#allocation5 + $0x148] sm:$0xff] %vm985, %v894
    %1028 = vst.msk [vmem:[#allocation5 + $0x150] sm:$0xff] %vm985, %v899
    %1029 = vst.msk [vmem:[#allocation5 + $0x158] sm:$0xff] %vm985, %v902
    %1030 = vst.msk [vmem:[#allocation5 + $0x160] sm:$0xff] %vm985, %v907
    %1031 = vst.msk [vmem:[#allocation5 + $0x168] sm:$0xff] %vm985, %v910
    %1032 = vst.msk [vmem:[#allocation5 + $0x170] sm:$0xff] %vm985, %v915
    %1033 = vst.msk [vmem:[#allocation5 + $0x178] sm:$0xff] %vm985, %v918
    %1034 = vst.msk [vmem:[#allocation5 + $0x180] sm:$0xff] %vm985, %v923
    %1035 = vst.msk [vmem:[#allocation5 + $0x188] sm:$0xff] %vm985, %v926
    %1036 = vst.msk [vmem:[#allocation5 + $0x190] sm:$0xff] %vm985, %v931
    %1037 = vst.msk [vmem:[#allocation5 + $0x198] sm:$0xff] %vm985, %v934
    %1038 = vst.msk [vmem:[#allocation5 + $0x1a0] sm:$0xff] %vm985, %v939
    %1039 = vst.msk [vmem:[#allocation5 + $0x1a8] sm:$0xff] %vm985, %v942
    %1040 = vst.msk [vmem:[#allocation5 + $0x1b0] sm:$0xff] %vm985, %v947
    %1041 = vst.msk [vmem:[#allocation5 + $0x1b8] sm:$0xff] %vm985, %v950
    %1042 = vst.msk [vmem:[#allocation5 + $0x1c0] sm:$0xff] %vm985, %v955
    %1043 = vst.msk [vmem:[#allocation5 + $0x1c8] sm:$0xff] %vm985, %v958
    %1044 = vst.msk [vmem:[#allocation5 + $0x1d0] sm:$0xff] %vm985, %v963
    %1045 = vst.msk [vmem:[#allocation5 + $0x1d8] sm:$0xff] %vm985, %v966
    %1046 = vst.msk [vmem:[#allocation5 + $0x1e0] sm:$0xff] %vm985, %v971
    %1047 = vst.msk [vmem:[#allocation5 + $0x1e8] sm:$0xff] %vm985, %v974
    %1048 = vst.msk [vmem:[#allocation5 + $0x1f0] sm:$0xff] %vm985, %v979
    %1049 = vst.msk [vmem:[#allocation5 + $0x1f8] sm:$0xff] %vm985, %v982
    // Predicated region
    $region18: #{neural_ca_forward.1} parent=1 // pred_check
      _
    $region19: #{neural_ca_forward.1} parent=1 // pred_check_branch
      %1051 = sbr.rel (0) target = $region21
    $region20: #{neural_ca_forward.1} parent=1 // pred_region
      %s1053 = ssub.s32 8192, 8192
      %1054 = vsyncadd [#allocation4], %s1053
      %s1055 = sshll.u32 [#allocation5], 4
      %s1056 = int_to_ptr.vmem [resolvable:$true] %s1055
      %1061 = dma.vmem_to_hbm [thread:$0]  %s1056, 8192, %s3, [#allocation4], 128, 128, 8
    $region21: #{neural_ca_forward.1} parent=1 // pred_fallthru
      _
    // Predicated region
    $region22: #{neural_ca_forward.1} parent=1 // pred_check
      _
    $region23: #{neural_ca_forward.1} parent=1 // pred_check_branch
      %1063 = sbr.rel (0) target = $region25
    $region24: #{neural_ca_forward.1} parent=1 // pred_region
      %1064 = dma.done [#allocation4], 8192
    $region25: #{neural_ca_forward.1} parent=1 // pred_fallthru
      _
    %1065 = vsyncpa [#allocation3], 1
    %1066 = vsyncpa [#allocation4], 1

</llo_original>
